<compile_context>
chip_gen: v5e
topology: v5e:2x2
jax: 0.10.0
libtpu: 0.0.40
codegen_flags: <defaults>
</compile_context>

<pallas_src>
import functools

import jax
import jax.numpy as jnp
from jax.experimental import pallas as pl
from jax.experimental.pallas import tpu as pltpu

_LANE = 128
_SUBLANE = 8
_TARGET_ROWS = 8192              # (8192,128) f32 block = 4 MiB; 2 in x 2 buf = 16 MiB
_VMEM_LIMIT = 32 * 1024 * 1024   # explicit scoped-VMEM limit (safe on v5e/v6e/v7x)


def _rmse_partial_kernel(yhat_ref, y_ref, partial_ref, *, tm):
    """Accumulate sum((yhat - y)^2) along the inner (arbitrary) grid axis.

    partial_ref's index_map ignores the inner axis, so its (1, 8, 128) block is
    resident in VMEM across all inner steps and acts as the accumulator:
    zeroed on the first step, added to on every step, written back to HBM once
    per outer split. Steady-state work is VPU-only (cast, sub, mul, vreg adds).
    """
    i = pl.program_id(1)

    @pl.when(i == 0)
    def _():
        partial_ref[...] = jnp.zeros_like(partial_ref)

    # Cast each operand BEFORE subtracting (required for bf16/fp16 precision).
    d = yhat_ref[...].astype(jnp.float32) - y_ref[...].astype(jnp.float32)
    sq = d * d
    # (tm, 128) -> (tm//8, 8, 128); reducing the leading axis is pure VPU adds
    # into a single vreg-shaped accumulator (no cross-lane work per step).
    partial_ref[0, ...] += jnp.sum(
        sq.reshape(tm // _SUBLANE, _SUBLANE, _LANE), axis=0
    )


def _num_core_splits():
    """2 if the chip has two TensorCores (v7x / v4 / v5p megacore), else 1."""
    try:
        kind = jax.devices()[0].device_kind.lower()
    except Exception:
        return 1
    if any(tag in kind for tag in ("v7", "v4", "v5p")):
        return 2
    return 1


def rmse_loss(yhat, y, eps=1e-6):
    """sqrt(mean((yhat - y)**2) + eps), matching torch RMSELoss.forward."""
    assert yhat.shape == y.shape, "RMSELoss expects matching shapes"
    total = yhat.size
    assert total > 0, "RMSELoss needs at least one element"

    yhat_f = jnp.ravel(yhat)
    y_f = jnp.ravel(y)

    m_full = total // _LANE
    itemsize = jnp.dtype(yhat.dtype).itemsize
    # Sublane packing: multiple of 8 for 32-bit, 16 for 16-bit dtypes.
    align = _SUBLANE if itemsize >= 4 else 2 * _SUBLANE

    # Only split the leading grid axis when a second TensorCore exists AND the
    # input is large enough to keep both cores busy.
    num_splits = 2 if (_num_core_splits() >= 2 and m_full >= 2 * _TARGET_ROWS) else 1
    rows_per_split = m_full // num_splits
    tm = min(_TARGET_ROWS, (rows_per_split // align) * align)

    main_sum = jnp.float32(0.0)
    main_elems = 0

    if tm >= align:
        steps = rows_per_split // tm
        main_rows = num_splits * steps * tm
        main_elems = main_rows * _LANE

        if total % _LANE == 0:
            # Free reshape of the whole flat array (no copy); the grid only
            # ever indexes the first main_rows rows, leftovers are never read.
            yhat2 = yhat_f.reshape(m_full, _LANE)
            y2 = y_f.reshape(m_full, _LANE)
        else:
            # Sub-128 ragged remainder: slice the aligned prefix (one bounded
            # copy); the remainder is folded in below with a fused reduction.
            yhat2 = yhat_f[:main_elems].reshape(main_rows, _LANE)
            y2 = y_f[:main_elems].reshape(main_rows, _LANE)

        kernel = functools.partial(_rmse_partial_kernel, tm=tm)
        in_map = lambda s, i: (s * steps + i, 0)

        partials = pl.pallas_call(
            kernel,
            out_shape=jax.ShapeDtypeStruct(
                (num_splits, _SUBLANE, _LANE), jnp.float32
            ),
            grid_spec=pltpu.PrefetchScalarGridSpec(
                num_scalar_prefetch=0,
                grid=(num_splits, steps),
                in_specs=[
                    pl.BlockSpec((tm, _LANE), in_map),
                    pl.BlockSpec((tm, _LANE), in_map),
                ],
                out_specs=pl.BlockSpec((1, _SUBLANE, _LANE), lambda s, i: (s, 0, 0)),
            ),
            compiler_params=pltpu.CompilerParams(
                # NOTE: "parallel" is the portable megacore tag; if profiling on
                # v7x shows only one core streaming, switch axis 0 to
                # pltpu.CORE_PARALLEL (or pl.core_map) for explicit fan-out.
                dimension_semantics=("parallel", "arbitrary"),
                vmem_limit_bytes=_VMEM_LIMIT,
            ),
            cost_estimate=pl.CostEstimate(
                flops=3 * main_elems,
                transcendentals=0,
                bytes_accessed=2 * main_elems * itemsize
                + num_splits * _SUBLANE * _LANE * 4,
            ),
        )(yhat2, y2)
        main_sum = jnp.sum(partials)

    # Tail not covered by the kernel grid (< num_splits*tm rows plus any
    # sub-128-element remainder): one fused jnp reduction straight from HBM.
    if main_elems < total:
        dt = yhat_f[main_elems:].astype(jnp.float32) - y_f[main_elems:].astype(
            jnp.float32
        )
        main_sum = main_sum + jnp.sum(dt * dt)

    # Cheap scalar finalize in plain JAX.
    mse = main_sum / jnp.float32(total)
    return jnp.sqrt(mse + jnp.float32(eps))


if __name__ == "__main__":
    key = jax.random.PRNGKey(0)
    k1, k2, k3, k4, k5, k6 = jax.random.split(key, 6)

    # Small NCHW-shaped synthetic inputs (batch=2, channels=4, spatial=16).
    x_shape = (2, 4, 16, 16)
    yhat = jax.random.normal(k1, x_shape, dtype=jnp.float32)
    y = jax.random.normal(k2, x_shape, dtype=jnp.float32)

    loss = rmse_loss(yhat, y, eps=1e-6)
    jax.block_until_ready(loss)
    ref = jnp.sqrt(jnp.mean((yhat - y) ** 2) + 1e-6)
    assert jnp.allclose(loss, ref, rtol=1e-5, atol=1e-6), (loss, ref)

    # 128-aligned total but row count not a multiple of the tile: exercises
    # the copy-free kernel prefix + fused jnp tail path.
    mid_shape = (2, 4, 33, 16)  # 4224 elements = 33 rows of 128
    yhat_m = jax.random.normal(k3, mid_shape, dtype=jnp.float32)
    y_m = jax.random.normal(k4, mid_shape, dtype=jnp.float32)
    loss_m = rmse_loss(yhat_m, y_m, eps=1e-6)
    jax.block_until_ready(loss_m)
    ref_m = jnp.sqrt(jnp.mean((yhat_m - y_m) ** 2) + 1e-6)
    assert jnp.allclose(loss_m, ref_m, rtol=1e-5, atol=1e-6), (loss_m, ref_m)

    # Odd element count (< 128 elements): entirely handled by the tail path.
    odd_shape = (3, 5, 7)
    yhat_o = jax.random.normal(k5, odd_shape, dtype=jnp.float32)
    y_o = jax.random.normal(k6, odd_shape, dtype=jnp.float32)
    loss_o = rmse_loss(yhat_o, y_o, eps=1e-6)
    jax.block_until_ready(loss_o)
    ref_o = jnp.sqrt(jnp.mean((yhat_o - y_o) ** 2) + 1e-6)
    assert jnp.allclose(loss_o, ref_o, rtol=1e-5, atol=1e-6), (loss_o, ref_o)

    print("KERNEL_OK")
</pallas_src>

<mosaic_0001>
module attributes {stable_mosaic.version = 11 : i64} {
  func.func @_rmse_partial_kernel(%arg0: i32, %arg1: i32, %arg2: memref<16x128xf32, #tpu.memory_space<vmem>>, %arg3: memref<16x128xf32, #tpu.memory_space<vmem>>, %arg4: memref<1x8x128xf32, #tpu.memory_space<vmem>>) attributes {dimension_semantics = [#tpu.dimension_semantics<parallel>, #tpu.dimension_semantics<arbitrary>], iteration_bounds = array<i64: 1, 1>, scalar_prefetch = 0 : i64, scratch_operands = 0 : i64, tpu.core_type = #tpu.core_type<tc>, window_params = [{transform_indices = @transform_0, window_bounds = array<i64: 16, 128>}, {transform_indices = @transform_1, window_bounds = array<i64: 16, 128>}, {transform_indices = @transform_2, window_bounds = array<i64: 1, 8, 128>}]} {
    %c0_i32 = arith.constant 0 : i32
    %0 = arith.cmpi eq, %arg1, %c0_i32 : i32
    %1 = arith.extui %0 : i1 to i32
    %c0_i32_0 = arith.constant 0 : i32
    %2 = arith.cmpi ne, %1, %c0_i32_0 : i32
    scf.if %2 {
      %cst_10 = arith.constant 0.000000e+00 : f32
      %15 = vector.broadcast %cst_10 : f32 to vector<1x8x128xf32>
      %c0_11 = arith.constant 0 : index
      %c0_12 = arith.constant 0 : index
      %c0_13 = arith.constant 0 : index
      %16 = vector.load %arg4[%c0_11, %c0_12, %c0_13] : memref<1x8x128xf32, #tpu.memory_space<vmem>>, vector<1x8x128xf32>
      tpu.vector_store %arg4[%c0_11, %c0_12, %c0_13], %15 {strides = array<i32>} : memref<1x8x128xf32, #tpu.memory_space<vmem>>, vector<1x8x128xf32>,
    } else {
    }
    %c0 = arith.constant 0 : index
    %c0_1 = arith.constant 0 : index
    %3 = vector.load %arg2[%c0, %c0_1] : memref<16x128xf32, #tpu.memory_space<vmem>>, vector<16x128xf32>
    %c0_2 = arith.constant 0 : index
    %c0_3 = arith.constant 0 : index
    %4 = vector.load %arg3[%c0_2, %c0_3] : memref<16x128xf32, #tpu.memory_space<vmem>>, vector<16x128xf32>
    %5 = arith.subf %3, %4 : vector<16x128xf32>
    %6 = arith.mulf %5, %5 : vector<16x128xf32>
    %c0_4 = arith.constant 0 : index
    %c0_5 = arith.constant 0 : index
    %c0_6 = arith.constant 0 : index
    %7 = vector.load %arg4[%c0_4, %c0_5, %c0_6] : memref<1x8x128xf32, #tpu.memory_space<vmem>>, vector<1x8x128xf32>
    %8 = vector.shape_cast %7 : vector<1x8x128xf32> to vector<8x128xf32>
    %9 = vector.shape_cast %6 : vector<16x128xf32> to vector<2x8x128xf32>
    %cst = arith.constant dense<0.000000e+00> : vector<8x128xf32>
    %10 = vector.multi_reduction <add>, %9, %cst [0] : vector<2x8x128xf32> to vector<8x128xf32>
    %11 = arith.addf %8, %10 : vector<8x128xf32>
    %c0_7 = arith.constant 0 : index
    %c0_8 = arith.constant 0 : index
    %c0_9 = arith.constant 0 : index
    %12 = vector.load %arg4[%c0_7, %c0_8, %c0_9] : memref<1x8x128xf32, #tpu.memory_space<vmem>>, vector<1x8x128xf32>
    %13 = vector.shape_cast %12 : vector<1x8x128xf32> to vector<8x128xf32>
    %14 = vector.shape_cast %11 : vector<8x128xf32> to vector<1x8x128xf32>
    tpu.vector_store %arg4[%c0_7, %c0_8, %c0_9], %14 {strides = array<i32>} : memref<1x8x128xf32, #tpu.memory_space<vmem>>, vector<1x8x128xf32>,
    return
  }
  func.func @transform_0(%arg0: i32, %arg1: i32) -> (i32, i32) {
    %c1_i32 = arith.constant 1 : i32
    %0 = arith.muli %arg0, %c1_i32 : i32
    %1 = arith.addi %0, %arg1 : i32
    %c0_i32 = arith.constant 0 : i32
    %c0_i32_0 = arith.constant 0 : i32
    return %1, %c0_i32 : i32, i32
  }
  func.func @transform_1(%arg0: i32, %arg1: i32) -> (i32, i32) {
    %c1_i32 = arith.constant 1 : i32
    %0 = arith.muli %arg0, %c1_i32 : i32
    %1 = arith.addi %0, %arg1 : i32
    %c0_i32 = arith.constant 0 : i32
    %c0_i32_0 = arith.constant 0 : i32
    return %1, %c0_i32 : i32, i32
  }
  func.func @transform_2(%arg0: i32, %arg1: i32) -> (i32, i32, i32) {
    %c0_i32 = arith.constant 0 : i32
    %c0_i32_0 = arith.constant 0 : i32
    %c0_i32_1 = arith.constant 0 : i32
    return %arg0, %c0_i32, %c0_i32_0 : i32, i32, i32
  }
}

</mosaic_0001>

<llo_original>
// kernel: tpu_custom_call.1
$region0: #{tpu_custom_call.1}
  #allocation0 [shape = 'u32[]', space=smem, size = 0x4, offset = 0x4, fixed_abs, tag = 'smem constant byte address 0x4 - core index']
  #allocation1 [shape = 'u32[72,128]{1,0:T(1,128)}', space=vmem, size = 0x9000, scoped, tag = 'internal scratch']
  %s0 = inlined_call_operand.hbm [shape: f32[16,128], index: 0, kind: input, shape index: {}]
  %s1 = inlined_call_operand.hbm [shape: f32[16,128], index: 1, kind: input, shape index: {}]
  %s2 = inlined_call_operand.hbm [shape: f32[1,8,128], index: 2, kind: output, shape index: {}]
  %s3 = sld [smem:[#allocation0]]
  $region30: #{tpu_custom_call.1} parent=0
    _
  %s5 = ssub.s32 1, %s3
  %s6 = scalar_select 0, %s5, %s3
  $region1: #{tpu_custom_call.1} parent=0
    #allocation2 [shape = 'u8[8192]{0}', space=vmem, size = 0x2000, scoped, tag = 'input window, operand 0, single buffered']
    #allocation3 [shape = 's32[1]{0}', space=sflag, size = 0x4, scoped, tag = 'scoped memory for tpu_custom_call.1']
    #allocation4 [shape = 's32[1]{0}', space=sflag, size = 0x4, scoped, tag = 'scoped memory for tpu_custom_call.1']
    #allocation5 [shape = 'u8[8192]{0}', space=vmem, size = 0x2000, scoped, tag = 'input window, operand 1, single buffered']
    #allocation6 [shape = 's32[1]{0}', space=sflag, size = 0x4, scoped, tag = 'scoped memory for tpu_custom_call.1']
    #allocation7 [shape = 'u8[4096]{0}', space=vmem, size = 0x1000, scoped, tag = 'output window, operand 0, single buffered']
    %7 = vsyncpa [#allocation3], 0
    %8 = vsyncpa [#allocation6], 0
    %9 = vsyncpa [#allocation4], 0
    // Predicated region
    $region2: #{tpu_custom_call.1} parent=1 // pred_check
      _
    $region3: #{tpu_custom_call.1} parent=1 // pred_check_branch
      %11 = sbr.rel (0) target = $region5
    $region4: #{tpu_custom_call.1} parent=1 // pred_region
      %s12 = sadd.s32 0, 0
      %s13 = smul.u32 2, %s12
      %15 = vsyncadd [#allocation3], 0
      %s16 = smul.addr %s13, 8
      %s17 = scalar_lea.hbm %s0, %s16
      %s18 = sshll.u32 %s17, 4
      %s19 = int_to_ptr.hbm [resolvable:$true] %s18
      %s20 = sshll.u32 [#allocation2], 4
      %s21 = int_to_ptr.vmem [resolvable:$true] %s20
      %26 = dma.hbm_to_vmem [thread:$0]  %s19, 256, %s21, [#allocation3], 128, 128, 8
    $region5: #{tpu_custom_call.1} parent=1 // pred_fallthru
      _
    // Predicated region
    $region6: #{tpu_custom_call.1} parent=1 // pred_check
      _
    $region7: #{tpu_custom_call.1} parent=1 // pred_check_branch
      %28 = sbr.rel (0) target = $region9
    $region8: #{tpu_custom_call.1} parent=1 // pred_region
      %s29 = sadd.s32 0, 0
      %s30 = smul.u32 2, %s29
      %32 = vsyncadd [#allocation6], 0
      %s33 = smul.addr %s30, 8
      %s34 = scalar_lea.hbm %s1, %s33
      %s35 = sshll.u32 %s34, 4
      %s36 = int_to_ptr.hbm [resolvable:$true] %s35
      %s37 = sshll.u32 [#allocation5], 4
      %s38 = int_to_ptr.vmem [resolvable:$true] %s37
      %43 = dma.hbm_to_vmem [thread:$0]  %s36, 256, %s38, [#allocation6], 128, 128, 8
    $region9: #{tpu_custom_call.1} parent=1 // pred_fallthru
      _
    // Predicated region
    $region10: #{tpu_custom_call.1} parent=1 // pred_check
      _
    $region11: #{tpu_custom_call.1} parent=1 // pred_check_branch
      %45 = sbr.rel (0) target = $region13
    $region12: #{tpu_custom_call.1} parent=1 // pred_region
      %47 = dma.done [#allocation3], 256
    $region13: #{tpu_custom_call.1} parent=1 // pred_fallthru
      _
    // Predicated region
    $region14: #{tpu_custom_call.1} parent=1 // pred_check
      _
    $region15: #{tpu_custom_call.1} parent=1 // pred_check_branch
      %49 = sbr.rel (0) target = $region17
    $region16: #{tpu_custom_call.1} parent=1 // pred_region
      %51 = dma.done [#allocation6], 256
    $region17: #{tpu_custom_call.1} parent=1 // pred_fallthru
      _
    %s52 = sadd.s32 0, 0
    %s53 = smul.u32 2, %s52
    %s54 = sadd.s32 0, 0
    %s55 = smul.u32 2, %s54
    %p56 = scmp.eq.s32.totalorder 0, 0
    // Predicated region
    $region18: #{tpu_custom_call.1} parent=1 // pred_check
      %p57 = pneg %p56
    $region19: #{tpu_custom_call.1} parent=1 // pred_check_branch
      %59 = sbr.rel (%p57) target = $region21
    $region20: #{tpu_custom_call.1} parent=1 // pred_region
      %60 = vst [vmem:[#allocation7] sm:$0xff] 0.0
    $region21: #{tpu_custom_call.1} parent=1 // pred_fallthru
      _
    %v61 = vld [vmem:[#allocation2] sm:$0xff]
    %v62 = vld [vmem:[#allocation2 + $0x8] sm:$0xff]
    %v63 = vld [vmem:[#allocation5] sm:$0xff]
    %v64 = vld [vmem:[#allocation5 + $0x8] sm:$0xff]
    %v65 = vsub.f32 %v61, %v63
    %v66 = vsub.f32 %v62, %v64
    %v67 = vmul.f32 %v65, %v65
    %v68 = vmul.f32 %v66, %v66
    %v69 = vld [vmem:[#allocation7] sm:$0xff]
    %v70 = vadd.f32 %v67, %v68
    %v71 = vadd.f32 %v69, %v70
    %72 = vst [vmem:[#allocation7] sm:$0xff] %v71
    // Predicated region
    $region22: #{tpu_custom_call.1} parent=1 // pred_check
      _
    $region23: #{tpu_custom_call.1} parent=1 // pred_check_branch
      %74 = sbr.rel (0) target = $region25
    $region24: #{tpu_custom_call.1} parent=1 // pred_region
      %76 = vsyncadd [#allocation4], 0
      %s78 = sshll.u32 [#allocation7], 4
      %s79 = int_to_ptr.vmem [resolvable:$true] %s78
      %s80 = sshll.u32 %s2, 4
      %s81 = int_to_ptr.hbm [resolvable:$true] %s80
      %83 = dma.vmem_to_hbm [thread:$0]  %s79, 128, %s81, [#allocation4]
    $region25: #{tpu_custom_call.1} parent=1 // pred_fallthru
      _
    // Predicated region
    $region26: #{tpu_custom_call.1} parent=1 // pred_check
      _
    $region27: #{tpu_custom_call.1} parent=1 // pred_check_branch
      %85 = sbr.rel (0) target = $region29
    $region28: #{tpu_custom_call.1} parent=1 // pred_region
      %87 = dma.done [#allocation4], 128
    $region29: #{tpu_custom_call.1} parent=1 // pred_fallthru
      _
    %88 = vsyncpa [#allocation3], 1
    %89 = vsyncpa [#allocation6], 1
    %90 = vsyncpa [#allocation4], 1

</llo_original>
